<compile_context>
chip_gen: v5e
topology: v5e:2x2
jax: 0.10.0
libtpu: 0.0.40
codegen_flags: <defaults>
</compile_context>

<pallas_src>
import math

import jax
import jax.numpy as jnp
from jax.experimental import pallas as pl
from jax.experimental.pallas import tpu as pltpu


def _round_up(n, m):
    return ((n + m - 1) // m) * m


def _sublane_multiple(dtype):
    # (8,128) tiling for 4-byte, (16,128) for 2-byte, (32,128) for 1-byte.
    return {4: 8, 2: 16, 1: 32}.get(jnp.dtype(dtype).itemsize, 8)


def _num_tensorcores():
    """Best-effort TensorCore count of the local chip (2 on v7x, else 1)."""
    try:
        kind = jax.devices()[0].device_kind.lower()
    except Exception:
        return 1
    return 2 if ("v7" in kind or "tpu7" in kind) else 1


def _choose_packing(d_model, d_inp, itemsize):
    """Rows packed per output block so the output last dim is lane-dense.

    g = 128 // gcd(d_model, 128) makes Ng = g*d_model a multiple of 128
    (unmasked vector stores).  We then widen toward a multiple of 256 (full
    MXU N on v6e/v7x) while the block-diagonal weight stays tiny.
    """
    g = 128 // math.gcd(d_model, 128)

    def w_bytes(gg):
        return gg * gg * d_inp * d_model * itemsize

    while (g * d_model) % 256 != 0:
        if g >= 256 or w_bytes(2 * g) > (2 << 20):
            break
        g *= 2
    if w_bytes(g) > (2 << 20):
        # TODO(synk): pathological d_model (huge, odd) falls back to masked
        #             stores; still correct, just slower.
        g = 1
    return g


def _choose_row_tile(m_rows, sub, num_tc, out_row_bytes, tm_max):
    """Largest sublane-aligned row tile under tm_max.

    On 2-TC chips (v7x) split into an even number of steps so the parallel
    grid axis load-balances across both TensorCores, but only when each step
    writes enough (>= 256 KiB) to amortize the ~0.35 us per-step overhead.
    On 1-TC chips (v5e/v6e) never split just to create a second step.
    """
    tm_max = max(_round_up(tm_max, sub), sub)
    if m_rows <= tm_max:
        tm = max(_round_up(m_rows, sub), sub)
        if num_tc >= 2:
            half = max(_round_up((m_rows + 1) // 2, sub), sub)
            if half < tm and half * out_row_bytes >= (256 << 10):
                tm = half
        return tm
    steps = -(-m_rows // tm_max)
    if num_tc >= 2 and steps % num_tc:
        steps += num_tc - steps % num_tc
    tm = max(_round_up(-(-m_rows // steps), sub), sub)
    return min(tm, tm_max)


def _linear_kernel(x_ref, w_ref, b_ref, o_ref):
    # x_ref: (tm, Kg), w_ref: (Kg, Ng), b_ref: (1, Ng) f32, o_ref: (tm, Ng)
    acc = jnp.dot(x_ref[...], w_ref[...], preferred_element_type=jnp.float32)
    o_ref[...] = (acc + b_ref[...]).astype(o_ref.dtype)


@jax.jit
def time_feature_embedding(x, weight, bias):
    """x: (..., d_inp); weight: (d_model, d_inp); bias: (d_model,)
    returns: (..., d_model)  ==  nn.Linear(d_inp, d_model)(x)"""
    d_model, d_inp = weight.shape
    lead = x.shape[:-1]
    M = max(math.prod(lead), 1)
    itemsize = jnp.dtype(x.dtype).itemsize
    sub = _sublane_multiple(x.dtype)
    num_tc = _num_tensorcores()

    # --- lane-dense output packing (contiguous reshapes; pad only if ragged)
    g = _choose_packing(d_model, d_inp, itemsize)
    # Pad M so (a) it is a multiple of g (packing reshape) and (b) the packed
    # row count Mg is sublane-aligned (valid block shapes for any tm).
    M_pad = _round_up(M, g * sub)
    Mg, Kg, Ng = M_pad // g, g * d_inp, g * d_model

    x_flat = x.reshape(M, d_inp)
    if M_pad != M:
        # A few zero rows of HBM traffic beat the ~4.5x masked-store fallback.
        x_flat = jnp.pad(x_flat, ((0, M_pad - M), (0, 0)))
    xg = x_flat.reshape(Mg, Kg)

    # Block-diagonal packed weight / tiled bias.  These are tiny; if the
    # parameters are static they can be precomputed once and reused.
    w_t = weight.T.astype(x.dtype)                            # (d_inp, d_model)
    if g == 1:
        w_blk = w_t
        b_blk = bias.reshape(1, d_model).astype(jnp.float32)
    else:
        w_blk = jnp.kron(jnp.eye(g, dtype=x.dtype), w_t)      # (Kg, Ng)
        b_blk = jnp.tile(bias, (g,)).reshape(1, Ng).astype(jnp.float32)

    # --- row tile: as large as a ~20 MiB double-buffered working set allows
    per_row_vmem = 2 * (max(Ng, 128) + max(Kg, 128)) * itemsize
    tm_cap = max(((20 << 20) // per_row_vmem) // sub * sub, sub)
    tm = _choose_row_tile(Mg, sub, num_tc, Ng * itemsize, min(8192, tm_cap))
    grid = (pl.cdiv(Mg, tm),)

    # Explicit VMEM limit sized from the actual footprint (+ headroom),
    # clamped to a value that is safe on every generation (v5e default is
    # only 16 MiB scoped; 32 MiB fits all chips).
    w_bytes = _round_up(max(Kg, sub), sub) * _round_up(Ng, 128) * itemsize
    b_bytes = sub * _round_up(Ng, 128) * 4
    footprint = tm * per_row_vmem + 2 * (w_bytes + b_bytes)
    vmem_limit = int(min(max(footprint + (4 << 20), 16 << 20), 32 << 20))

    cost = pl.CostEstimate(
        flops=2 * Mg * Kg * Ng,
        transcendentals=0,
        bytes_accessed=(Mg * Kg + Mg * Ng) * itemsize
        + w_blk.size * itemsize + b_blk.size * 4,
    )

    out = pl.pallas_call(
        _linear_kernel,
        out_shape=jax.ShapeDtypeStruct((Mg, Ng), x.dtype),
        grid_spec=pltpu.PrefetchScalarGridSpec(
            num_scalar_prefetch=0,
            grid=grid,
            in_specs=[
                pl.BlockSpec((tm, Kg), lambda i: (i, 0)),
                pl.BlockSpec((Kg, Ng), lambda i: (0, 0)),
                pl.BlockSpec((1, Ng), lambda i: (0, 0)),
            ],
            out_specs=pl.BlockSpec((tm, Ng), lambda i: (i, 0)),
        ),
        compiler_params=pltpu.CompilerParams(
            dimension_semantics=("parallel",),
            vmem_limit_bytes=vmem_limit,
        ),
        cost_estimate=cost,
    )(xg, w_blk, b_blk)

    # Unpack: (Mg, g*d_model) row-major == (M_pad, d_model) row-major -> free.
    out = out.reshape(M_pad, d_model)
    if M_pad != M:
        out = out[:M]
    return out.reshape(*lead, d_model)


if __name__ == "__main__":
    # Small shapes consistent with the module.
    batch, seq_len = 2, 96
    freq = "diw"                                  # -> d_inp = 2
    d_inp = {"hid": 1, "diw": 2}[freq]
    d_model = 32

    key = jax.random.PRNGKey(0)
    kx, kw, kb = jax.random.split(key, 3)

    x = jax.random.normal(kx, (batch, seq_len, d_inp), dtype=jnp.float32)

    # Deterministic nn.Linear-style init: U(-1/sqrt(d_inp), 1/sqrt(d_inp))
    bound = 1.0 / math.sqrt(d_inp)
    weight = jax.random.uniform(kw, (d_model, d_inp), jnp.float32, -bound, bound)
    bias = jax.random.uniform(kb, (d_model,), jnp.float32, -bound, bound)

    y = time_feature_embedding(x, weight, bias)
    y = jax.block_until_ready(y)

    # Reference check in plain JAX (same linear).
    y_ref = jnp.einsum("bld,md->blm", x, weight) + bias
    assert y.shape == (batch, seq_len, d_model)
    assert jnp.allclose(y, y_ref, atol=1e-5, rtol=1e-5), \
        float(jnp.max(jnp.abs(y - y_ref)))

    print("KERNEL_OK")
</pallas_src>

<mosaic_0001>
module attributes {stable_mosaic.version = 11 : i64} {
  func.func @_linear_kernel(%arg0: i32, %arg1: memref<24x16xf32, #tpu.memory_space<vmem>>, %arg2: memref<16x256xf32, #tpu.memory_space<vmem>>, %arg3: memref<1x256xf32, #tpu.memory_space<vmem>>, %arg4: memref<24x256xf32, #tpu.memory_space<vmem>>) attributes {dimension_semantics = [#tpu.dimension_semantics<parallel>], iteration_bounds = array<i64: 1>, scalar_prefetch = 0 : i64, scratch_operands = 0 : i64, tpu.core_type = #tpu.core_type<tc>, window_params = [{transform_indices = @transform_0, window_bounds = array<i64: 24, 16>}, {pipeline_mode = #tpu.pipeline_mode<synchronous>, transform_indices = @transform_1, window_bounds = array<i64: 16, 256>}, {pipeline_mode = #tpu.pipeline_mode<synchronous>, transform_indices = @transform_2, window_bounds = array<i64: 1, 256>}, {transform_indices = @transform_3, window_bounds = array<i64: 24, 256>}]} {
    %c0 = arith.constant 0 : index
    %c0_0 = arith.constant 0 : index
    %0 = vector.load %arg1[%c0, %c0_0] : memref<24x16xf32, #tpu.memory_space<vmem>>, vector<24x16xf32>
    %c0_1 = arith.constant 0 : index
    %c0_2 = arith.constant 0 : index
    %1 = vector.load %arg2[%c0_1, %c0_2] : memref<16x256xf32, #tpu.memory_space<vmem>>, vector<16x256xf32>
    %cst = arith.constant dense<0.000000e+00> : vector<24x256xf32>
    %2 = tpu.matmul %0, %1, %cst {dimension_numbers = #tpu.dot_dimension_numbers<[1], [0], [0], [1], [0, 0, 1, 1], [], []>} : vector<24x16xf32>, vector<16x256xf32>, vector<24x256xf32> -> vector<24x256xf32>
    %c0_3 = arith.constant 0 : index
    %c0_4 = arith.constant 0 : index
    %3 = vector.load %arg3[%c0_3, %c0_4] : memref<1x256xf32, #tpu.memory_space<vmem>>, vector<1x256xf32>
    %4 = vector.broadcast %3 : vector<1x256xf32> to vector<24x256xf32>
    %5 = arith.addf %2, %4 : vector<24x256xf32>
    %c0_5 = arith.constant 0 : index
    %c0_6 = arith.constant 0 : index
    %6 = vector.load %arg4[%c0_5, %c0_6] : memref<24x256xf32, #tpu.memory_space<vmem>>, vector<24x256xf32>
    tpu.vector_store %arg4[%c0_5, %c0_6], %5 {strides = array<i32>} : memref<24x256xf32, #tpu.memory_space<vmem>>, vector<24x256xf32>,
    return
  }
  func.func @transform_0(%arg0: i32) -> (i32, i32) {
    %c0_i32 = arith.constant 0 : i32
    %c0_i32_0 = arith.constant 0 : i32
    return %arg0, %c0_i32 : i32, i32
  }
  func.func @transform_1(%arg0: i32) -> (i32, i32) {
    %c0_i32 = arith.constant 0 : i32
    %c0_i32_0 = arith.constant 0 : i32
    %c0_i32_1 = arith.constant 0 : i32
    return %c0_i32, %c0_i32_0 : i32, i32
  }
  func.func @transform_2(%arg0: i32) -> (i32, i32) {
    %c0_i32 = arith.constant 0 : i32
    %c0_i32_0 = arith.constant 0 : i32
    %c0_i32_1 = arith.constant 0 : i32
    return %c0_i32, %c0_i32_0 : i32, i32
  }
  func.func @transform_3(%arg0: i32) -> (i32, i32) {
    %c0_i32 = arith.constant 0 : i32
    %c0_i32_0 = arith.constant 0 : i32
    return %arg0, %c0_i32 : i32, i32
  }
}

</mosaic_0001>

<llo_original>
// kernel: tile.8
$region0: #{tile.8}
  #allocation0 [shape = 's32[1]{0}', space=sflag, size = 0x4, scoped, tag = 'scoped memory for tile.8']
  %s0 = inlined_call_operand.vmem [shape: f32[32], index: 0, kind: input, shape index: {}]
  %s1 = inlined_call_operand.vmem [shape: f32[8,32], index: 1, kind: output, shape index: {}]
  // Predicated region
  $region2: #{tile.8} parent=0 // pred_check
    _
  $region3: #{tile.8} parent=0 // pred_check_branch
    %3 = sbr.rel (0) target = $region5
  $region4: #{tile.8} parent=0 // pred_region
    _
  $region5: #{tile.8} parent=0 // pred_fallthru
    _
  %v4 = vld [vmem:[%s0] ss:$0 sm:$0xff]
  %5 = vst [vmem:[%s1] sm:$0xff] %v4

// kernel: tile.9
$region0: #{tile.9}
  %s0 = inlined_call_operand.vmem [shape: f32[8,32], index: 0, kind: input, shape index: {}]
  %s1 = inlined_call_operand.vmem [shape: f32[1,256], index: 1, kind: output, shape index: {}]
  $region1: #{tile.9} parent=0
    #allocation0 [shape = 'u8[8192]{0}', space=vmem, size = 0x2000, scoped, tag = 'scoped mem for output reshape']
    %s2 = smov 3
    %v3 = vld [vmem:[%s0] ss:$4 sm:%s2]
    %vm4 = vcmask 261120
    %5 = vst.msk [vmem:[#allocation0] ss:$8 sm:$0x3] %vm4, %v3
    %s6 = scalar_lea.vmem %s0, 3
    %s7 = smov 3
    %v8 = vld [vmem:[%s6] ss:$4 sm:%s7]
    %9 = vrot.lane.b32.xlu0 %v8, 96
    %v10 = vpop.permute.xlu0 %9
    %vm11 = vcmask 1048320
    %12 = vst.msk [vmem:[#allocation0] ss:$8 sm:$0x3] %vm11, %v10
    %s13 = scalar_lea.vmem %s0, 2
    %s14 = smov 3
    %v15 = vld [vmem:[%s13] ss:$4 sm:%s14]
    %16 = vrot.lane.b32.xlu0 %v15, 64
    %v17 = vpop.permute.xlu0 %16
    %vm18 = vcmask 785920
    %19 = vst.msk [vmem:[#allocation0] ss:$8 sm:$0x3] %vm18, %v17
    %s20 = scalar_lea.vmem %s0, 1
    %s21 = smov 3
    %v22 = vld [vmem:[%s20] ss:$4 sm:%s21]
    %23 = vrot.lane.b32.xlu0 %v22, 32
    %v24 = vpop.permute.xlu0 %23
    %vm25 = vcmask 523520
    %26 = vst.msk [vmem:[#allocation0] ss:$8 sm:$0x3] %vm25, %v24
    %s28 = ssub.s32 2, 1
    %v29 = vld [vmem:[#allocation0] sm:%s28]
    %s31 = ssub.s32 2, 1
    %32 = vst [vmem:[%s1] sm:%s31] %v29
    %s33 = scalar_lea.vmem [#allocation0], 8
    %v34 = vld [vmem:[%s33] sm:%s28]
    %s36 = ssub.s32 2, 1
    %s37 = scalar_lea.vmem %s1, 1
    %38 = vst [vmem:[%s37] sm:%s36] %v34

// kernel: time_feature_embedding.1
$region0: #{time_feature_embedding.1}
  #allocation0 [shape = 'u32[]', space=smem, size = 0x4, offset = 0x4, fixed_abs, tag = 'smem constant byte address 0x4 - core index']
  #allocation1 [shape = 'u32[72,128]{1,0:T(1,128)}', space=vmem, size = 0x9000, scoped, tag = 'internal scratch']
  %s0 = inlined_call_operand.vmem [shape: f32[24,16], index: 0, kind: input, shape index: {}]
  %s1 = inlined_call_operand.vmem [shape: f32[16,256], index: 1, kind: input, shape index: {}]
  %s2 = inlined_call_operand.vmem [shape: f32[1,256], index: 2, kind: input, shape index: {}]
  %s3 = inlined_call_operand.vmem [shape: f32[24,256], index: 3, kind: output, shape index: {}]
  %s4 = sld [smem:[#allocation0]]
  $region22: #{time_feature_embedding.1} parent=0
    _
  %s6 = ssub.s32 1, %s4
  %s7 = scalar_select 0, %s6, %s4
  // Predicated region
  $region2: #{time_feature_embedding.1} parent=0 // pred_check
    _
  $region3: #{time_feature_embedding.1} parent=0 // pred_check_branch
    %9 = sbr.rel (0) target = $region5
  $region4: #{time_feature_embedding.1} parent=0 // pred_region
    _
  $region5: #{time_feature_embedding.1} parent=0 // pred_fallthru
    _
  // Predicated region
  $region6: #{time_feature_embedding.1} parent=0 // pred_check
    _
  $region7: #{time_feature_embedding.1} parent=0 // pred_check_branch
    %11 = sbr.rel (0) target = $region9
  $region8: #{time_feature_embedding.1} parent=0 // pred_region
    _
  $region9: #{time_feature_embedding.1} parent=0 // pred_fallthru
    _
  // Predicated region
  $region10: #{time_feature_embedding.1} parent=0 // pred_check
    _
  $region11: #{time_feature_embedding.1} parent=0 // pred_check_branch
    %13 = sbr.rel (0) target = $region13
  $region12: #{time_feature_embedding.1} parent=0 // pred_region
    _
  $region13: #{time_feature_embedding.1} parent=0 // pred_fallthru
    _
  %v14 = vld [vmem:[%s0] sm:$0xff]
  %v15 = vld [vmem:[%s0 + $0x8] sm:$0xff]
  %v16 = vld [vmem:[%s0 + $0x10] sm:$0xff]
  %v17 = vld [vmem:[%s1] sm:$0xff]
  %v18 = vld [vmem:[%s1 + $0x8] sm:$0xff]
  %v19 = vld [vmem:[%s1 + $0x10] sm:$0xff]
  %v20 = vld [vmem:[%s1 + $0x18] sm:$0xff]
  %v21 = vld [vmem:[%s2] sm:$0x3]
  %v23 = vperm.slane %v21, 0
  %v24 = vperm.slane %v21, 1
  %vm27 = vcmask 130048
  %v29 = vsel %vm27, %v14, 0
  %v32 = vsel %vm27, %v15, 0
  %v35 = vsel %vm27, %v16, 0
  %37 = vmatpush.msra.mxu0 0.0
  %38 = vmatpush.msra.mxu0 0.0
  %39 = vmatpush.msra.mxu0 0.0
  %40 = vmatpush.msra.mxu0 0.0
  %41 = vmatpush.msra.mxu0 0.0
  %42 = vmatpush.msra.mxu0 0.0
  %43 = vmatpush.msra.mxu0 0.0
  %44 = vmatpush.msra.mxu0 0.0
  %45 = vmatpush.msra.mxu0 0.0
  %46 = vmatpush.msra.mxu0 0.0
  %47 = vmatpush.msra.mxu0 0.0
  %48 = vmatpush.msra.mxu0 0.0
  %49 = vmatpush.msra.mxu0 0.0
  %50 = vmatpush.msra.mxu0 0.0
  %51 = vmatpush.msra.mxu0 %v19
  %52 = vmatpush.msra.mxu0 %v17
  %53 = vmatmul.f32.gmra.mxu0 %v29
  %v54 = vpop.f32.mrf.mxu0
  %v55 = vadd.f32 %v23, %v54
  %56 = vmatmul.f32.gmra.mxu0 %v32
  %v57 = vpop.f32.mrf.mxu0
  %v58 = vadd.f32 %v23, %v57
  %59 = vmatmul.f32.gmra.mxu0 %v35
  %v60 = vpop.f32.mrf.mxu0
  %v61 = vadd.f32 %v23, %v60
  %62 = vdwg.mxu0
  %63 = vmatpush.msra.mxu0 0.0
  %64 = vmatpush.msra.mxu0 0.0
  %65 = vmatpush.msra.mxu0 0.0
  %66 = vmatpush.msra.mxu0 0.0
  %67 = vmatpush.msra.mxu0 0.0
  %68 = vmatpush.msra.mxu0 0.0
  %69 = vmatpush.msra.mxu0 0.0
  %70 = vmatpush.msra.mxu0 0.0
  %71 = vmatpush.msra.mxu0 0.0
  %72 = vmatpush.msra.mxu0 0.0
  %73 = vmatpush.msra.mxu0 0.0
  %74 = vmatpush.msra.mxu0 0.0
  %75 = vmatpush.msra.mxu0 0.0
  %76 = vmatpush.msra.mxu0 0.0
  %77 = vmatpush.msra.mxu0 %v20
  %78 = vmatpush.msra.mxu0 %v18
  %79 = vmatmul.f32.gmra.mxu0 %v29
  %v80 = vpop.f32.mrf.mxu0
  %v81 = vadd.f32 %v24, %v80
  %82 = vmatmul.f32.gmra.mxu0 %v32
  %v83 = vpop.f32.mrf.mxu0
  %v84 = vadd.f32 %v24, %v83
  %85 = vmatmul.f32.gmra.mxu0 %v35
  %v86 = vpop.f32.mrf.mxu0
  %v87 = vadd.f32 %v24, %v86
  %88 = vdwg.mxu0
  %89 = vst [vmem:[%s3] sm:$0xff] %v55
  %90 = vst [vmem:[%s3 + $0x8] sm:$0xff] %v81
  %91 = vst [vmem:[%s3 + $0x10] sm:$0xff] %v58
  %92 = vst [vmem:[%s3 + $0x18] sm:$0xff] %v84
  %93 = vst [vmem:[%s3 + $0x20] sm:$0xff] %v61
  %94 = vst [vmem:[%s3 + $0x28] sm:$0xff] %v87
  // Predicated region
  $region14: #{time_feature_embedding.1} parent=0 // pred_check
    _
  $region15: #{time_feature_embedding.1} parent=0 // pred_check_branch
    %96 = sbr.rel (0) target = $region17
  $region16: #{time_feature_embedding.1} parent=0 // pred_region
    _
  $region17: #{time_feature_embedding.1} parent=0 // pred_fallthru
    _
  // Predicated region
  $region18: #{time_feature_embedding.1} parent=0 // pred_check
    _
  $region19: #{time_feature_embedding.1} parent=0 // pred_check_branch
    %98 = sbr.rel (0) target = $region21
  $region20: #{time_feature_embedding.1} parent=0 // pred_region
    _
  $region21: #{time_feature_embedding.1} parent=0 // pred_fallthru
    _

</llo_original>
